<compile_context>
chip_gen: v5e
topology: v5e:2x2
jax: 0.10.0
libtpu: 0.0.40
codegen_flags: <defaults>
</compile_context>

<pallas_src>
import functools

import jax
import jax.numpy as jnp
from jax.experimental import pallas as pl
from jax.experimental.pallas import tpu as pltpu


def _round_up(x, m):
    return ((x + m - 1) // m) * m


# ----------------------------------------------------------------------------
# Kernel 1: patch embedding (bf16 MXU matmul, f32 accumulation) + LayerNorm.
# Grid: 1-D over padded BN token rows ("parallel").
#   xp:        [TILE, CPP] bf16   (streamed, double-buffered)
#   w:         [CPP,  D]   bf16   (resident across the grid)
#   b, g, beta:[1, D]      f32    (resident)
#   out:       [TILE, D]   f32    -> x_norm_patchtokens rows
# ----------------------------------------------------------------------------
def patch_embed_ln_kernel(xp_ref, w_ref, b_ref, g_ref, beta_ref, out_ref):
    emb = jnp.dot(xp_ref[...], w_ref[...], preferred_element_type=jnp.float32)
    emb = emb + b_ref[...]
    # One-pass LayerNorm statistics in f32 (eps = 1e-6, matches reference).
    mu = jnp.mean(emb, axis=-1, keepdims=True)
    var = jnp.mean(emb * emb, axis=-1, keepdims=True) - mu * mu
    out_ref[...] = (emb - mu) * jax.lax.rsqrt(var + 1e-6) * g_ref[...] + beta_ref[...]


def patch_embed_ln(xp_bf16, w_pe_bf16, b_pe, gamma, beta, *, tile_bn):
    bn_pad, cpp = xp_bf16.shape
    d = w_pe_bf16.shape[1]
    grid = (bn_pad // tile_bn,)

    # VMEM budget: 2x double-buffered in/out tiles + resident params + margin.
    vmem_need = (2 * tile_bn * cpp * 2      # xp tiles, bf16
                 + 2 * tile_bn * d * 4      # out tiles, f32
                 + cpp * d * 2              # resident weight, bf16
                 + 3 * d * 4)               # bias / gamma / beta, f32
    vmem_limit = min(2 * vmem_need + (4 << 20), 64 << 20)

    return pl.pallas_call(
        patch_embed_ln_kernel,
        out_shape=jax.ShapeDtypeStruct((bn_pad, d), jnp.float32),
        grid=grid,
        in_specs=[
            pl.BlockSpec((tile_bn, cpp), lambda i: (i, 0)),
            pl.BlockSpec((cpp, d), lambda i: (0, 0)),
            pl.BlockSpec((1, d), lambda i: (0, 0)),
            pl.BlockSpec((1, d), lambda i: (0, 0)),
            pl.BlockSpec((1, d), lambda i: (0, 0)),
        ],
        out_specs=pl.BlockSpec((tile_bn, d), lambda i: (i, 0)),
        compiler_params=pltpu.CompilerParams(
            dimension_semantics=("parallel",),
            vmem_limit_bytes=vmem_limit,
        ),
    )(xp_bf16, w_pe_bf16, b_pe, gamma, beta)


# ----------------------------------------------------------------------------
# Kernel 2: ModifiedDINO head — streamed mean over N tokens + Linear classifier.
# Grid: 1-D over N tiles (reduction axis, "arbitrary") with a VMEM accumulator.
#   feat: [B, TN, D] f32  (streamed, double-buffered; padded tokens are zero)
#   w:    [D, Kp]    f32  (resident, lane-dense padded classifier weight)
#   b:    [1, Kp]    f32
#   out:  [B, Kp]    f32  (written on the last grid step)
# ----------------------------------------------------------------------------
def head_kernel(feat_ref, w_ref, b_ref, out_ref, acc_ref, *, inv_n):
    n = pl.program_id(0)

    @pl.when(n == 0)
    def _():
        acc_ref[...] = jnp.zeros_like(acc_ref)

    acc_ref[...] += jnp.sum(feat_ref[...], axis=1)          # partial token sum

    @pl.when(n == pl.num_programs(0) - 1)
    def _():
        pooled = acc_ref[...] * inv_n                        # mean over dim=1
        logits = jnp.dot(pooled, w_ref[...], preferred_element_type=jnp.float32)
        out_ref[...] = logits + b_ref[...]


def dino_head(feat_pad, w_cls_t, b_cls, *, n_tokens, tn):
    b, n_pad, d = feat_pad.shape
    kp = w_cls_t.shape[1]
    grid = (n_pad // tn,)

    vmem_need = (2 * b * tn * d * 4 + d * kp * 4 + kp * 4 + b * kp * 4 + b * d * 4)
    vmem_limit = min(2 * vmem_need + (4 << 20), 64 << 20)

    kernel = functools.partial(head_kernel, inv_n=1.0 / float(n_tokens))
    return pl.pallas_call(
        kernel,
        out_shape=jax.ShapeDtypeStruct((b, kp), jnp.float32),
        grid=grid,
        in_specs=[
            pl.BlockSpec((b, tn, d), lambda n: (0, n, 0)),
            pl.BlockSpec((d, kp), lambda n: (0, 0)),
            pl.BlockSpec((1, kp), lambda n: (0, 0)),
        ],
        out_specs=pl.BlockSpec((b, kp), lambda n: (0, 0)),
        scratch_shapes=[pltpu.VMEM((b, d), jnp.float32)],
        compiler_params=pltpu.CompilerParams(
            dimension_semantics=("arbitrary",),
            vmem_limit_bytes=vmem_limit,
        ),
    )(feat_pad, w_cls_t, b_cls)


def modified_dino_forward(x, params, patch=16):
    """x: [B, C, H, W] NCHW float32. Returns logits [B, num_classes] float32."""
    B, C, H, W = x.shape
    nh, nw = H // patch, W // patch
    N = nh * nw
    D = params["w_pe"].shape[1]
    K = params["w_cls"].shape[0]

    # glue: im2col — extract non-overlapping patches (== stride-p conv).
    # TODO(synk): this transpose materialises the [B*N, C*p*p] tensor in HBM;
    #             moving patch extraction into the kernel (manual DMA from an
    #             HBM-resident NHWC image) would remove that round-trip.
    xp = x.reshape(B, C, nh, patch, nw, patch)
    xp = xp.transpose(0, 2, 4, 1, 3, 5).reshape(B * N, C * patch * patch)

    # bf16 MXU inputs; accumulation + LayerNorm stay f32 inside the kernel.
    xp_bf16 = xp.astype(jnp.bfloat16)
    w_pe_bf16 = params["w_pe"].astype(jnp.bfloat16)

    # Pad token rows to a multiple of the BN tile (>=16 for bf16 sublanes).
    BN = B * N
    tile_bn = min(512, _round_up(BN, 16))
    bn_pad = _round_up(BN, tile_bn)
    if bn_pad != BN:
        xp_bf16 = jnp.pad(xp_bf16, ((0, bn_pad - BN), (0, 0)))

    tokens = patch_embed_ln(
        xp_bf16, w_pe_bf16, params["b_pe"], params["ln_g"], params["ln_b"],
        tile_bn=tile_bn,
    )                                                     # [bn_pad, D] f32
    features = tokens[:BN].reshape(B, N, D)               # x_norm_patchtokens

    # glue: nn.Linear weight is [K, D]; kernel consumes lane-dense [D, Kp].
    Kp = _round_up(K, 128)
    w_cls_t = jnp.zeros((D, Kp), jnp.float32).at[:, :K].set(params["w_cls"].T)
    b_cls_p = jnp.zeros((1, Kp), jnp.float32).at[:, :K].set(
        params["b_cls"].reshape(1, K))

    # Pad N (reduction axis) with zero tokens to a multiple of the N tile.
    tn = min(64, _round_up(N, 8))
    n_pad = _round_up(N, tn)
    feat_pad = features
    if n_pad != N:
        feat_pad = jnp.pad(features, ((0, 0), (0, n_pad - N), (0, 0)))

    logits_p = dino_head(feat_pad, w_cls_t, b_cls_p, n_tokens=N, tn=tn)  # [B, Kp]
    return logits_p[:, :K]


def reference_forward(x, params, patch=16):
    """Pure-JAX reference with the same bf16 patch-embed inputs / f32 accum."""
    B, C, H, W = x.shape
    nh, nw = H // patch, W // patch
    N = nh * nw
    xp = x.reshape(B, C, nh, patch, nw, patch)
    xp = xp.transpose(0, 2, 4, 1, 3, 5).reshape(B * N, C * patch * patch)
    emb = jnp.dot(xp.astype(jnp.bfloat16), params["w_pe"].astype(jnp.bfloat16),
                  preferred_element_type=jnp.float32) + params["b_pe"]
    mu = emb.mean(-1, keepdims=True)
    var = ((emb - mu) ** 2).mean(-1, keepdims=True)
    tok = (emb - mu) / jnp.sqrt(var + 1e-6) * params["ln_g"] + params["ln_b"]
    feat = tok.reshape(B, N, -1).mean(axis=1)
    return feat @ params["w_cls"].T + params["b_cls"]


if __name__ == "__main__":
    # Small shapes consistent with the forward pass: B=2 images, C=3, 32x32,
    # patch=16 -> N=4 patch tokens. D=128 keeps the lane axis dense (real DINO
    # D=768 is also a multiple of 128); K=8 classes padded to 128 in glue.
    B, C, H, W = 2, 3, 32, 32
    PATCH = 16
    FEATURE_DIM = 128
    NUM_CLASSES = 8
    CPP = C * PATCH * PATCH

    key = jax.random.PRNGKey(0)
    kx, kpe, kbpe, kwc, kbc = jax.random.split(key, 5)

    x = jax.random.normal(kx, (B, C, H, W), dtype=jnp.float32)
    params = {
        "w_pe": jax.random.normal(kpe, (CPP, FEATURE_DIM), jnp.float32) * 0.02,
        "b_pe": jax.random.normal(kbpe, (1, FEATURE_DIM), jnp.float32) * 0.02,
        "ln_g": jnp.ones((1, FEATURE_DIM), jnp.float32),
        "ln_b": jnp.zeros((1, FEATURE_DIM), jnp.float32),
        # PyTorch nn.Linear(feature_dim, num_classes): weight [K, D], bias [K]
        "w_cls": jax.random.normal(kwc, (NUM_CLASSES, FEATURE_DIM), jnp.float32) * 0.05,
        "b_cls": jax.random.normal(kbc, (1, NUM_CLASSES), jnp.float32) * 0.05,
    }

    logits = modified_dino_forward(x, params, patch=PATCH)
    logits = jax.block_until_ready(logits)

    ref = reference_forward(x, params, patch=PATCH)
    assert logits.shape == (B, NUM_CLASSES)
    max_diff = float(jnp.max(jnp.abs(logits - ref)))
    assert jnp.allclose(logits, ref, atol=2e-3, rtol=2e-3), (
        f"mismatch vs reference, max abs diff {max_diff}")

    print("KERNEL_OK")
</pallas_src>

<mosaic_0001>
module attributes {stable_mosaic.version = 11 : i64} {
  func.func @patch_embed_ln_kernel(%arg0: i32, %arg1: memref<16x768xbf16, #tpu.memory_space<vmem>>, %arg2: memref<768x128xbf16, #tpu.memory_space<vmem>>, %arg3: memref<1x128xf32, #tpu.memory_space<vmem>>, %arg4: memref<1x128xf32, #tpu.memory_space<vmem>>, %arg5: memref<1x128xf32, #tpu.memory_space<vmem>>, %arg6: memref<16x128xf32, #tpu.memory_space<vmem>>) attributes {dimension_semantics = [#tpu.dimension_semantics<parallel>], iteration_bounds = array<i64: 1>, scalar_prefetch = 0 : i64, scratch_operands = 0 : i64, tpu.core_type = #tpu.core_type<tc>, window_params = [{transform_indices = @transform_0, window_bounds = array<i64: 16, 768>}, {pipeline_mode = #tpu.pipeline_mode<synchronous>, transform_indices = @transform_1, window_bounds = array<i64: 768, 128>}, {pipeline_mode = #tpu.pipeline_mode<synchronous>, transform_indices = @transform_2, window_bounds = array<i64: 1, 128>}, {pipeline_mode = #tpu.pipeline_mode<synchronous>, transform_indices = @transform_3, window_bounds = array<i64: 1, 128>}, {pipeline_mode = #tpu.pipeline_mode<synchronous>, transform_indices = @transform_4, window_bounds = array<i64: 1, 128>}, {transform_indices = @transform_5, window_bounds = array<i64: 16, 128>}]} {
    %c0 = arith.constant 0 : index
    %c0_0 = arith.constant 0 : index
    %0 = vector.load %arg1[%c0, %c0_0] : memref<16x768xbf16, #tpu.memory_space<vmem>>, vector<16x768xbf16>
    %c0_1 = arith.constant 0 : index
    %c0_2 = arith.constant 0 : index
    %1 = vector.load %arg2[%c0_1, %c0_2] : memref<768x128xbf16, #tpu.memory_space<vmem>>, vector<768x128xbf16>
    %cst = arith.constant dense<0.000000e+00> : vector<16x128xf32>
    %2 = tpu.matmul %0, %1, %cst {dimension_numbers = #tpu.dot_dimension_numbers<[1], [0], [0], [1], [0, 0, 1, 1], [], []>} : vector<16x768xbf16>, vector<768x128xbf16>, vector<16x128xf32> -> vector<16x128xf32>
    %c0_3 = arith.constant 0 : index
    %c0_4 = arith.constant 0 : index
    %3 = vector.load %arg3[%c0_3, %c0_4] : memref<1x128xf32, #tpu.memory_space<vmem>>, vector<1x128xf32>
    %4 = vector.broadcast %3 : vector<1x128xf32> to vector<16x128xf32>
    %5 = arith.addf %2, %4 : vector<16x128xf32>
    %cst_5 = arith.constant dense<0.000000e+00> : vector<16xf32>
    %6 = vector.multi_reduction <add>, %5, %cst_5 [1] : vector<16x128xf32> to vector<16xf32>
    %7 = vector.shape_cast %6 : vector<16xf32> to vector<16x1xf32>
    %cst_6 = arith.constant 1.280000e+02 : f32
    %8 = vector.broadcast %cst_6 : f32 to vector<16x1xf32>
    %9 = arith.divf %7, %8 : vector<16x1xf32>
    %10 = arith.mulf %5, %5 : vector<16x128xf32>
    %cst_7 = arith.constant dense<0.000000e+00> : vector<16xf32>
    %11 = vector.multi_reduction <add>, %10, %cst_7 [1] : vector<16x128xf32> to vector<16xf32>
    %12 = vector.shape_cast %11 : vector<16xf32> to vector<16x1xf32>
    %cst_8 = arith.constant 1.280000e+02 : f32
    %13 = vector.broadcast %cst_8 : f32 to vector<16x1xf32>
    %14 = arith.divf %12, %13 : vector<16x1xf32>
    %15 = arith.mulf %9, %9 : vector<16x1xf32>
    %16 = arith.subf %14, %15 : vector<16x1xf32>
    %17 = vector.broadcast %9 : vector<16x1xf32> to vector<16x128xf32>
    %18 = arith.subf %5, %17 : vector<16x128xf32>
    %cst_9 = arith.constant 9.99999997E-7 : f32
    %19 = vector.broadcast %cst_9 : f32 to vector<16x1xf32>
    %20 = arith.addf %16, %19 : vector<16x1xf32>
    %21 = math.rsqrt %20 : vector<16x1xf32>
    %22 = vector.broadcast %21 : vector<16x1xf32> to vector<16x128xf32>
    %23 = arith.mulf %18, %22 : vector<16x128xf32>
    %c0_10 = arith.constant 0 : index
    %c0_11 = arith.constant 0 : index
    %24 = vector.load %arg4[%c0_10, %c0_11] : memref<1x128xf32, #tpu.memory_space<vmem>>, vector<1x128xf32>
    %25 = vector.broadcast %24 : vector<1x128xf32> to vector<16x128xf32>
    %26 = arith.mulf %23, %25 : vector<16x128xf32>
    %c0_12 = arith.constant 0 : index
    %c0_13 = arith.constant 0 : index
    %27 = vector.load %arg5[%c0_12, %c0_13] : memref<1x128xf32, #tpu.memory_space<vmem>>, vector<1x128xf32>
    %28 = vector.broadcast %27 : vector<1x128xf32> to vector<16x128xf32>
    %29 = arith.addf %26, %28 : vector<16x128xf32>
    %c0_14 = arith.constant 0 : index
    %c0_15 = arith.constant 0 : index
    %30 = vector.load %arg6[%c0_14, %c0_15] : memref<16x128xf32, #tpu.memory_space<vmem>>, vector<16x128xf32>
    tpu.vector_store %arg6[%c0_14, %c0_15], %29 {strides = array<i32>} : memref<16x128xf32, #tpu.memory_space<vmem>>, vector<16x128xf32>,
    return
  }
  func.func @transform_0(%arg0: i32) -> (i32, i32) {
    %c0_i32 = arith.constant 0 : i32
    %c0_i32_0 = arith.constant 0 : i32
    return %arg0, %c0_i32 : i32, i32
  }
  func.func @transform_1(%arg0: i32) -> (i32, i32) {
    %c0_i32 = arith.constant 0 : i32
    %c0_i32_0 = arith.constant 0 : i32
    %c0_i32_1 = arith.constant 0 : i32
    return %c0_i32, %c0_i32_0 : i32, i32
  }
  func.func @transform_2(%arg0: i32) -> (i32, i32) {
    %c0_i32 = arith.constant 0 : i32
    %c0_i32_0 = arith.constant 0 : i32
    %c0_i32_1 = arith.constant 0 : i32
    return %c0_i32, %c0_i32_0 : i32, i32
  }
  func.func @transform_3(%arg0: i32) -> (i32, i32) {
    %c0_i32 = arith.constant 0 : i32
    %c0_i32_0 = arith.constant 0 : i32
    %c0_i32_1 = arith.constant 0 : i32
    return %c0_i32, %c0_i32_0 : i32, i32
  }
  func.func @transform_4(%arg0: i32) -> (i32, i32) {
    %c0_i32 = arith.constant 0 : i32
    %c0_i32_0 = arith.constant 0 : i32
    %c0_i32_1 = arith.constant 0 : i32
    return %c0_i32, %c0_i32_0 : i32, i32
  }
  func.func @transform_5(%arg0: i32) -> (i32, i32) {
    %c0_i32 = arith.constant 0 : i32
    %c0_i32_0 = arith.constant 0 : i32
    return %arg0, %c0_i32 : i32, i32
  }
}

</mosaic_0001>

<llo_original>
// kernel: tpu_custom_call.1
$region0: #{tpu_custom_call.1}
  #allocation0 [shape = 'u32[]', space=smem, size = 0x4, offset = 0x4, fixed_abs, tag = 'smem constant byte address 0x4 - core index']
  #allocation1 [shape = 'u32[72,128]{1,0:T(1,128)}', space=vmem, size = 0x9000, scoped, tag = 'internal scratch']
  %s0 = inlined_call_operand.hbm [shape: bf16[16,768], index: 0, kind: input, shape index: {}]
  %s1 = inlined_call_operand.hbm [shape: bf16[768,128], index: 1, kind: input, shape index: {}]
  %s2 = inlined_call_operand.vmem [shape: f32[1,128], index: 2, kind: input, shape index: {}]
  %s3 = inlined_call_operand.vmem [shape: f32[1,128], index: 3, kind: input, shape index: {}]
  %s4 = inlined_call_operand.vmem [shape: f32[1,128], index: 4, kind: input, shape index: {}]
  %s5 = inlined_call_operand.hbm [shape: f32[16,128], index: 5, kind: output, shape index: {}]
  %s6 = sld [smem:[#allocation0]]
  $region38: #{tpu_custom_call.1} parent=0
    _
  %s8 = ssub.s32 1, %s6
  %s9 = scalar_select 0, %s8, %s6
  $region1: #{tpu_custom_call.1} parent=0
    #allocation2 [shape = 'u8[24576]{0}', space=vmem, size = 0x6000, scoped, tag = 'input window, operand 0, single buffered']
    #allocation3 [shape = 's32[1]{0}', space=sflag, size = 0x4, scoped, tag = 'scoped memory for tpu_custom_call.1']
    #allocation4 [shape = 's32[1]{0}', space=sflag, size = 0x4, scoped, tag = 'scoped memory for tpu_custom_call.1']
    #allocation5 [shape = 'u8[196608]{0}', space=vmem, size = 0x30000, scoped, tag = 'input window, operand 1, single buffered']
    #allocation6 [shape = 's32[1]{0}', space=sflag, size = 0x4, scoped, tag = 'scoped memory for tpu_custom_call.1']
    #allocation7 [shape = 'u8[8192]{0}', space=vmem, size = 0x2000, scoped, tag = 'output window, operand 0, single buffered']
    %10 = vsyncpa [#allocation3], 0
    %11 = vsyncpa [#allocation6], 0
    %12 = vsyncpa [#allocation4], 0
    // Predicated region
    $region2: #{tpu_custom_call.1} parent=1 // pred_check
      _
    $region3: #{tpu_custom_call.1} parent=1 // pred_check_branch
      %14 = sbr.rel (0) target = $region5
    $region4: #{tpu_custom_call.1} parent=1 // pred_region
      %16 = vsyncadd [#allocation3], 0
      %s17 = sshll.u32 %s0, 4
      %s18 = int_to_ptr.hbm [resolvable:$true] %s17
      %s19 = sshll.u32 [#allocation2], 4
      %s20 = int_to_ptr.vmem [resolvable:$true] %s19
      %25 = dma.hbm_to_vmem [thread:$0]  %s18, 768, %s20, [#allocation3], 384, 384, 24
    $region5: #{tpu_custom_call.1} parent=1 // pred_fallthru
      _
    // Predicated region
    $region6: #{tpu_custom_call.1} parent=1 // pred_check
      _
    $region7: #{tpu_custom_call.1} parent=1 // pred_check_branch
      %27 = sbr.rel (0) target = $region9
    $region8: #{tpu_custom_call.1} parent=1 // pred_region
      %29 = vsyncadd [#allocation6], 0
      %s30 = sshll.u32 %s1, 4
      %s31 = int_to_ptr.hbm [resolvable:$true] %s30
      %s32 = sshll.u32 [#allocation5], 4
      %s33 = int_to_ptr.vmem [resolvable:$true] %s32
      %38 = dma.hbm_to_vmem [thread:$0]  %s31, 6144, %s33, [#allocation6], 64, 64, 4
    $region9: #{tpu_custom_call.1} parent=1 // pred_fallthru
      _
    // Predicated region
    $region10: #{tpu_custom_call.1} parent=1 // pred_check
      _
    $region11: #{tpu_custom_call.1} parent=1 // pred_check_branch
      %40 = sbr.rel (0) target = $region13
    $region12: #{tpu_custom_call.1} parent=1 // pred_region
      _
    $region13: #{tpu_custom_call.1} parent=1 // pred_fallthru
      _
    // Predicated region
    $region14: #{tpu_custom_call.1} parent=1 // pred_check
      _
    $region15: #{tpu_custom_call.1} parent=1 // pred_check_branch
      %42 = sbr.rel (0) target = $region17
    $region16: #{tpu_custom_call.1} parent=1 // pred_region
      _
    $region17: #{tpu_custom_call.1} parent=1 // pred_fallthru
      _
    // Predicated region
    $region18: #{tpu_custom_call.1} parent=1 // pred_check
      _
    $region19: #{tpu_custom_call.1} parent=1 // pred_check_branch
      %44 = sbr.rel (0) target = $region21
    $region20: #{tpu_custom_call.1} parent=1 // pred_region
      _
    $region21: #{tpu_custom_call.1} parent=1 // pred_fallthru
      _
    // Predicated region
    $region22: #{tpu_custom_call.1} parent=1 // pred_check
      _
    $region23: #{tpu_custom_call.1} parent=1 // pred_check_branch
      %46 = sbr.rel (0) target = $region25
    $region24: #{tpu_custom_call.1} parent=1 // pred_region
      %48 = dma.done [#allocation3], 768
    $region25: #{tpu_custom_call.1} parent=1 // pred_fallthru
      _
    // Predicated region
    $region26: #{tpu_custom_call.1} parent=1 // pred_check
      _
    $region27: #{tpu_custom_call.1} parent=1 // pred_check_branch
      %50 = sbr.rel (0) target = $region29
    $region28: #{tpu_custom_call.1} parent=1 // pred_region
      %52 = dma.done [#allocation6], 6144
    $region29: #{tpu_custom_call.1} parent=1 // pred_fallthru
      _
    %v53 = vld [vmem:[#allocation2] sm:$0xff]
    %v54 = vld [vmem:[#allocation2 + $0x8] sm:$0xff]
    %v55 = vld [vmem:[#allocation2 + $0x10] sm:$0xff]
    %v56 = vld [vmem:[#allocation2 + $0x18] sm:$0xff]
    %v57 = vld [vmem:[#allocation2 + $0x20] sm:$0xff]
    %v58 = vld [vmem:[#allocation2 + $0x28] sm:$0xff]
    %v59 = vld [vmem:[#allocation5] sm:$0xf]
    %v60 = vld [vmem:[#allocation5 + $0x4] sm:$0xf]
    %v61 = vld [vmem:[#allocation5 + $0x8] sm:$0xf]
    %v62 = vld [vmem:[#allocation5 + $0xc] sm:$0xf]
    %v63 = vld [vmem:[#allocation5 + $0x10] sm:$0xf]
    %v64 = vld [vmem:[#allocation5 + $0x14] sm:$0xf]
    %v65 = vld [vmem:[#allocation5 + $0x18] sm:$0xf]
    %v66 = vld [vmem:[#allocation5 + $0x1c] sm:$0xf]
    %v67 = vld [vmem:[#allocation5 + $0x20] sm:$0xf]
    %v68 = vld [vmem:[#allocation5 + $0x24] sm:$0xf]
    %v69 = vld [vmem:[#allocation5 + $0x28] sm:$0xf]
    %v70 = vld [vmem:[#allocation5 + $0x2c] sm:$0xf]
    %v71 = vld [vmem:[#allocation5 + $0x30] sm:$0xf]
    %v72 = vld [vmem:[#allocation5 + $0x34] sm:$0xf]
    %v73 = vld [vmem:[#allocation5 + $0x38] sm:$0xf]
    %v74 = vld [vmem:[#allocation5 + $0x3c] sm:$0xf]
    %v75 = vld [vmem:[#allocation5 + $0x40] sm:$0xf]
    %v76 = vld [vmem:[#allocation5 + $0x44] sm:$0xf]
    %v77 = vld [vmem:[#allocation5 + $0x48] sm:$0xf]
    %v78 = vld [vmem:[#allocation5 + $0x4c] sm:$0xf]
    %v79 = vld [vmem:[#allocation5 + $0x50] sm:$0xf]
    %v80 = vld [vmem:[#allocation5 + $0x54] sm:$0xf]
    %v81 = vld [vmem:[#allocation5 + $0x58] sm:$0xf]
    %v82 = vld [vmem:[#allocation5 + $0x5c] sm:$0xf]
    %v83 = vld [vmem:[#allocation5 + $0x60] sm:$0xf]
    %v84 = vld [vmem:[#allocation5 + $0x64] sm:$0xf]
    %v85 = vld [vmem:[#allocation5 + $0x68] sm:$0xf]
    %v86 = vld [vmem:[#allocation5 + $0x6c] sm:$0xf]
    %v87 = vld [vmem:[#allocation5 + $0x70] sm:$0xf]
    %v88 = vld [vmem:[#allocation5 + $0x74] sm:$0xf]
    %v89 = vld [vmem:[#allocation5 + $0x78] sm:$0xf]
    %v90 = vld [vmem:[#allocation5 + $0x7c] sm:$0xf]
    %v91 = vld [vmem:[#allocation5 + $0x80] sm:$0xf]
    %v92 = vld [vmem:[#allocation5 + $0x84] sm:$0xf]
    %v93 = vld [vmem:[#allocation5 + $0x88] sm:$0xf]
    %v94 = vld [vmem:[#allocation5 + $0x8c] sm:$0xf]
    %v95 = vld [vmem:[#allocation5 + $0x90] sm:$0xf]
    %v96 = vld [vmem:[#allocation5 + $0x94] sm:$0xf]
    %v97 = vld [vmem:[#allocation5 + $0x98] sm:$0xf]
    %v98 = vld [vmem:[#allocation5 + $0x9c] sm:$0xf]
    %v99 = vld [vmem:[#allocation5 + $0xa0] sm:$0xf]
    %v100 = vld [vmem:[#allocation5 + $0xa4] sm:$0xf]
    %v101 = vld [vmem:[#allocation5 + $0xa8] sm:$0xf]
    %v102 = vld [vmem:[#allocation5 + $0xac] sm:$0xf]
    %v103 = vld [vmem:[#allocation5 + $0xb0] sm:$0xf]
    %v104 = vld [vmem:[#allocation5 + $0xb4] sm:$0xf]
    %v105 = vld [vmem:[#allocation5 + $0xb8] sm:$0xf]
    %v106 = vld [vmem:[#allocation5 + $0xbc] sm:$0xf]
    %v107 = vld [vmem:[#allocation5 + $0xc0] sm:$0xf]
    %v108 = vld [vmem:[#allocation5 + $0xc4] sm:$0xf]
    %v109 = vld [vmem:[#allocation5 + $0xc8] sm:$0xf]
    %v110 = vld [vmem:[#allocation5 + $0xcc] sm:$0xf]
    %v111 = vld [vmem:[#allocation5 + $0xd0] sm:$0xf]
    %v112 = vld [vmem:[#allocation5 + $0xd4] sm:$0xf]
    %v113 = vld [vmem:[#allocation5 + $0xd8] sm:$0xf]
    %v114 = vld [vmem:[#allocation5 + $0xdc] sm:$0xf]
    %v115 = vld [vmem:[#allocation5 + $0xe0] sm:$0xf]
    %v116 = vld [vmem:[#allocation5 + $0xe4] sm:$0xf]
    %v117 = vld [vmem:[#allocation5 + $0xe8] sm:$0xf]
    %v118 = vld [vmem:[#allocation5 + $0xec] sm:$0xf]
    %v119 = vld [vmem:[#allocation5 + $0xf0] sm:$0xf]
    %v120 = vld [vmem:[#allocation5 + $0xf4] sm:$0xf]
    %v121 = vld [vmem:[#allocation5 + $0xf8] sm:$0xf]
    %v122 = vld [vmem:[#allocation5 + $0xfc] sm:$0xf]
    %v123 = vld [vmem:[#allocation5 + $0x100] sm:$0xf]
    %v124 = vld [vmem:[#allocation5 + $0x104] sm:$0xf]
    %v125 = vld [vmem:[#allocation5 + $0x108] sm:$0xf]
    %v126 = vld [vmem:[#allocation5 + $0x10c] sm:$0xf]
    %v127 = vld [vmem:[#allocation5 + $0x110] sm:$0xf]
    %v128 = vld [vmem:[#allocation5 + $0x114] sm:$0xf]
    %v129 = vld [vmem:[#allocation5 + $0x118] sm:$0xf]
    %v130 = vld [vmem:[#allocation5 + $0x11c] sm:$0xf]
    %v131 = vld [vmem:[#allocation5 + $0x120] sm:$0xf]
    %v132 = vld [vmem:[#allocation5 + $0x124] sm:$0xf]
    %v133 = vld [vmem:[#allocation5 + $0x128] sm:$0xf]
    %v134 = vld [vmem:[#allocation5 + $0x12c] sm:$0xf]
    %v135 = vld [vmem:[#allocation5 + $0x130] sm:$0xf]
    %v136 = vld [vmem:[#allocation5 + $0x134] sm:$0xf]
    %v137 = vld [vmem:[#allocation5 + $0x138] sm:$0xf]
    %v138 = vld [vmem:[#allocation5 + $0x13c] sm:$0xf]
    %v139 = vld [vmem:[#allocation5 + $0x140] sm:$0xf]
    %v140 = vld [vmem:[#allocation5 + $0x144] sm:$0xf]
    %v141 = vld [vmem:[#allocation5 + $0x148] sm:$0xf]
    %v142 = vld [vmem:[#allocation5 + $0x14c] sm:$0xf]
    %v143 = vld [vmem:[#allocation5 + $0x150] sm:$0xf]
    %v144 = vld [vmem:[#allocation5 + $0x154] sm:$0xf]
    %v145 = vld [vmem:[#allocation5 + $0x158] sm:$0xf]
    %v146 = vld [vmem:[#allocation5 + $0x15c] sm:$0xf]
    %v147 = vld [vmem:[#allocation5 + $0x160] sm:$0xf]
    %v148 = vld [vmem:[#allocation5 + $0x164] sm:$0xf]
    %v149 = vld [vmem:[#allocation5 + $0x168] sm:$0xf]
    %v150 = vld [vmem:[#allocation5 + $0x16c] sm:$0xf]
    %v151 = vld [vmem:[#allocation5 + $0x170] sm:$0xf]
    %v152 = vld [vmem:[#allocation5 + $0x174] sm:$0xf]
    %v153 = vld [vmem:[#allocation5 + $0x178] sm:$0xf]
    %v154 = vld [vmem:[#allocation5 + $0x17c] sm:$0xf]
    %v155 = vld [vmem:[%s2] sm:$0x1]
    %v157 = vperm.slane %v155, 0
    %v165 = vunpack.c.l.b16 %v53
    %v166 = vunpack.c.h.b16 %v53
    %v167 = vunpack.c.l.b16 %v54
    %v168 = vunpack.c.h.b16 %v54
    %v169 = vunpack.c.l.b16 %v55
    %v170 = vunpack.c.h.b16 %v55
    %v171 = vunpack.c.l.b16 %v56
    %v172 = vunpack.c.h.b16 %v56
    %v173 = vunpack.c.l.b16 %v57
    %v174 = vunpack.c.h.b16 %v57
    %v175 = vunpack.c.l.b16 %v58
    %v176 = vunpack.c.h.b16 %v58
    %v177 = vpack.c.b16 %v171, %v165
    %v178 = vpack.c.b16 %v172, %v166
    %v179 = vpack.c.b16 %v173, %v167
    %v180 = vpack.c.b16 %v174, %v168
    %v181 = vpack.c.b16 %v175, %v169
    %v182 = vpack.c.b16 %v176, %v170
    %v285 = vunpack.c.l.b16 %v59
    %v286 = vunpack.c.l.b16 %v60
    %v287 = vunpack.c.l.b16 %v61
    %v288 = vunpack.c.l.b16 %v62
    %v289 = vunpack.c.l.b16 %v63
    %v290 = vunpack.c.l.b16 %v64
    %v291 = vunpack.c.l.b16 %v65
    %v292 = vunpack.c.l.b16 %v66
    %v293 = vunpack.c.l.b16 %v67
    %v294 = vunpack.c.l.b16 %v68
    %v295 = vunpack.c.l.b16 %v69
    %v296 = vunpack.c.l.b16 %v70
    %v297 = vunpack.c.l.b16 %v71
    %v298 = vunpack.c.l.b16 %v72
    %v299 = vunpack.c.l.b16 %v73
    %v300 = vunpack.c.l.b16 %v74
    %v301 = vunpack.c.l.b16 %v75
    %v302 = vunpack.c.l.b16 %v76
    %v303 = vunpack.c.l.b16 %v77
    %v304 = vunpack.c.l.b16 %v78
    %v305 = vunpack.c.l.b16 %v79
    %v306 = vunpack.c.l.b16 %v80
    %v307 = vunpack.c.l.b16 %v81
    %v308 = vunpack.c.l.b16 %v82
    %v309 = vunpack.c.l.b16 %v83
    %v310 = vunpack.c.l.b16 %v84
    %v311 = vunpack.c.l.b16 %v85
    %v312 = vunpack.c.l.b16 %v86
    %v313 = vunpack.c.l.b16 %v87
    %v314 = vunpack.c.l.b16 %v88
    %v315 = vunpack.c.l.b16 %v89
    %v316 = vunpack.c.l.b16 %v90
    %v317 = vunpack.c.l.b16 %v91
    %v318 = vunpack.c.l.b16 %v92
    %v319 = vunpack.c.l.b16 %v93
    %v320 = vunpack.c.l.b16 %v94
    %v321 = vunpack.c.l.b16 %v95
    %v322 = vunpack.c.l.b16 %v96
    %v323 = vunpack.c.l.b16 %v97
    %v324 = vunpack.c.l.b16 %v98
    %v325 = vunpack.c.l.b16 %v99
    %v326 = vunpack.c.l.b16 %v100
    %v327 = vunpack.c.l.b16 %v101
    %v328 = vunpack.c.l.b16 %v102
    %v329 = vunpack.c.l.b16 %v103
    %v330 = vunpack.c.l.b16 %v104
    %v331 = vunpack.c.l.b16 %v105
    %v332 = vunpack.c.l.b16 %v106
    %v333 = vunpack.c.l.b16 %v107
    %v334 = vunpack.c.l.b16 %v108
    %v335 = vunpack.c.l.b16 %v109
    %v336 = vunpack.c.l.b16 %v110
    %v337 = vunpack.c.l.b16 %v111
    %v338 = vunpack.c.l.b16 %v112
    %v339 = vunpack.c.l.b16 %v113
    %v340 = vunpack.c.l.b16 %v114
    %v341 = vunpack.c.l.b16 %v115
    %v342 = vunpack.c.l.b16 %v116
    %v343 = vunpack.c.l.b16 %v117
    %v344 = vunpack.c.l.b16 %v118
    %v345 = vunpack.c.l.b16 %v119
    %v346 = vunpack.c.l.b16 %v120
    %v347 = vunpack.c.l.b16 %v121
    %v348 = vunpack.c.l.b16 %v122
    %v349 = vunpack.c.l.b16 %v123
    %v350 = vunpack.c.l.b16 %v124
    %v351 = vunpack.c.l.b16 %v125
    %v352 = vunpack.c.l.b16 %v126
    %v353 = vunpack.c.l.b16 %v127
    %v354 = vunpack.c.l.b16 %v128
    %v355 = vunpack.c.l.b16 %v129
    %v356 = vunpack.c.l.b16 %v130
    %v357 = vunpack.c.l.b16 %v131
    %v358 = vunpack.c.l.b16 %v132
    %v359 = vunpack.c.l.b16 %v133
    %v360 = vunpack.c.l.b16 %v134
    %v361 = vunpack.c.l.b16 %v135
    %v362 = vunpack.c.l.b16 %v136
    %v363 = vunpack.c.l.b16 %v137
    %v364 = vunpack.c.l.b16 %v138
    %v365 = vunpack.c.l.b16 %v139
    %v366 = vunpack.c.l.b16 %v140
    %v367 = vunpack.c.l.b16 %v141
    %v368 = vunpack.c.l.b16 %v142
    %v369 = vunpack.c.l.b16 %v143
    %v370 = vunpack.c.l.b16 %v144
    %v371 = vunpack.c.l.b16 %v145
    %v372 = vunpack.c.l.b16 %v146
    %v373 = vunpack.c.l.b16 %v147
    %v374 = vunpack.c.l.b16 %v148
    %v375 = vunpack.c.l.b16 %v149
    %v376 = vunpack.c.l.b16 %v150
    %v377 = vunpack.c.l.b16 %v151
    %v378 = vunpack.c.l.b16 %v152
    %v379 = vunpack.c.l.b16 %v153
    %v380 = vunpack.c.l.b16 %v154
    %v381 = vpack.c.b16 %v286, %v285
    %v382 = vpack.c.b16 %v288, %v287
    %v383 = vpack.c.b16 %v290, %v289
    %v384 = vpack.c.b16 %v292, %v291
    %v385 = vpack.c.b16 %v294, %v293
    %v386 = vpack.c.b16 %v296, %v295
    %v387 = vpack.c.b16 %v298, %v297
    %v388 = vpack.c.b16 %v300, %v299
    %v389 = vpack.c.b16 %v302, %v301
    %v390 = vpack.c.b16 %v304, %v303
    %v391 = vpack.c.b16 %v306, %v305
    %v392 = vpack.c.b16 %v308, %v307
    %v393 = vpack.c.b16 %v310, %v309
    %v394 = vpack.c.b16 %v312, %v311
    %v395 = vpack.c.b16 %v314, %v313
    %v396 = vpack.c.b16 %v316, %v315
    %v397 = vpack.c.b16 %v318, %v317
    %v398 = vpack.c.b16 %v320, %v319
    %v399 = vpack.c.b16 %v322, %v321
    %v400 = vpack.c.b16 %v324, %v323
    %v401 = vpack.c.b16 %v326, %v325
    %v402 = vpack.c.b16 %v328, %v327
    %v403 = vpack.c.b16 %v330, %v329
    %v404 = vpack.c.b16 %v332, %v331
    %v405 = vpack.c.b16 %v334, %v333
    %v406 = vpack.c.b16 %v336, %v335
    %v407 = vpack.c.b16 %v338, %v337
    %v408 = vpack.c.b16 %v340, %v339
    %v409 = vpack.c.b16 %v342, %v341
    %v410 = vpack.c.b16 %v344, %v343
    %v411 = vpack.c.b16 %v346, %v345
    %v412 = vpack.c.b16 %v348, %v347
    %v413 = vpack.c.b16 %v350, %v349
    %v414 = vpack.c.b16 %v352, %v351
    %v415 = vpack.c.b16 %v354, %v353
    %v416 = vpack.c.b16 %v356, %v355
    %v417 = vpack.c.b16 %v358, %v357
    %v418 = vpack.c.b16 %v360, %v359
    %v419 = vpack.c.b16 %v362, %v361
    %v420 = vpack.c.b16 %v364, %v363
    %v421 = vpack.c.b16 %v366, %v365
    %v422 = vpack.c.b16 %v368, %v367
    %v423 = vpack.c.b16 %v370, %v369
    %v424 = vpack.c.b16 %v372, %v371
    %v425 = vpack.c.b16 %v374, %v373
    %v426 = vpack.c.b16 %v376, %v375
    %v427 = vpack.c.b16 %v378, %v377
    %v428 = vpack.c.b16 %v380, %v379
    %477 = vmatpush.bf16.msra.mxu0 %v388
    %478 = vmatpush.bf16.msra.mxu0 %v387
    %479 = vmatpush.bf16.msra.mxu0 %v386
    %480 = vmatpush.bf16.msra.mxu0 %v385
    %481 = vmatpush.bf16.msra.mxu0 %v384
    %482 = vmatpush.bf16.msra.mxu0 %v383
    %483 = vmatpush.bf16.msra.mxu0 %v382
    %484 = vmatpush.bf16.msra.mxu0 %v381
    %485 = vmatmul.bf16.gmra.mxu0 %v177
    %v486 = vpop.f32.mrf.mxu0
    %v487 = vadd.f32 %v157, %v486
    %v488 = vpop.f32.mrf.mxu0
    %v489 = vadd.f32 %v157, %v488
    %490 = vdwg.mxu0
    %491 = vmatpush.bf16.msra.mxu0 %v396
    %492 = vmatpush.bf16.msra.mxu0 %v395
    %493 = vmatpush.bf16.msra.mxu0 %v394
    %494 = vmatpush.bf16.msra.mxu0 %v393
    %495 = vmatpush.bf16.msra.mxu0 %v392
    %496 = vmatpush.bf16.msra.mxu0 %v391
    %497 = vmatpush.bf16.msra.mxu0 %v390
    %498 = vmatpush.bf16.msra.mxu0 %v389
    %499 = vmatmul.bf16.gmra.mxu0 %v178
    %v500 = vpop.f32.mrf.mxu0
    %v501 = vadd.f32 %v487, %v500
    %v502 = vpop.f32.mrf.mxu0
    %v503 = vadd.f32 %v489, %v502
    %504 = vdwg.mxu0
    %505 = vmatpush.bf16.msra.mxu0 %v404
    %506 = vmatpush.bf16.msra.mxu0 %v403
    %507 = vmatpush.bf16.msra.mxu0 %v402
    %508 = vmatpush.bf16.msra.mxu0 %v401
    %509 = vmatpush.bf16.msra.mxu0 %v400
    %510 = vmatpush.bf16.msra.mxu0 %v399
    %511 = vmatpush.bf16.msra.mxu0 %v398
    %512 = vmatpush.bf16.msra.mxu0 %v397
    %513 = vmatmul.bf16.gmra.mxu0 %v179
    %v514 = vpop.f32.mrf.mxu0
    %v515 = vadd.f32 %v501, %v514
    %v516 = vpop.f32.mrf.mxu0
    %v517 = vadd.f32 %v503, %v516
    %518 = vdwg.mxu0
    %519 = vmatpush.bf16.msra.mxu0 %v412
    %520 = vmatpush.bf16.msra.mxu0 %v411
    %521 = vmatpush.bf16.msra.mxu0 %v410
    %522 = vmatpush.bf16.msra.mxu0 %v409
    %523 = vmatpush.bf16.msra.mxu0 %v408
    %524 = vmatpush.bf16.msra.mxu0 %v407
    %525 = vmatpush.bf16.msra.mxu0 %v406
    %526 = vmatpush.bf16.msra.mxu0 %v405
    %527 = vmatmul.bf16.gmra.mxu0 %v180
    %v528 = vpop.f32.mrf.mxu0
    %v529 = vadd.f32 %v515, %v528
    %v530 = vpop.f32.mrf.mxu0
    %v531 = vadd.f32 %v517, %v530
    %532 = vdwg.mxu0
    %533 = vmatpush.bf16.msra.mxu0 %v420
    %534 = vmatpush.bf16.msra.mxu0 %v419
    %535 = vmatpush.bf16.msra.mxu0 %v418
    %536 = vmatpush.bf16.msra.mxu0 %v417
    %537 = vmatpush.bf16.msra.mxu0 %v416
    %538 = vmatpush.bf16.msra.mxu0 %v415
    %539 = vmatpush.bf16.msra.mxu0 %v414
    %540 = vmatpush.bf16.msra.mxu0 %v413
    %541 = vmatmul.bf16.gmra.mxu0 %v181
    %v542 = vpop.f32.mrf.mxu0
    %v543 = vadd.f32 %v529, %v542
    %v544 = vpop.f32.mrf.mxu0
    %v545 = vadd.f32 %v531, %v544
    %546 = vdwg.mxu0
    %547 = vmatpush.bf16.msra.mxu0 %v428
    %548 = vmatpush.bf16.msra.mxu0 %v427
    %549 = vmatpush.bf16.msra.mxu0 %v426
    %550 = vmatpush.bf16.msra.mxu0 %v425
    %551 = vmatpush.bf16.msra.mxu0 %v424
    %552 = vmatpush.bf16.msra.mxu0 %v423
    %553 = vmatpush.bf16.msra.mxu0 %v422
    %554 = vmatpush.bf16.msra.mxu0 %v421
    %555 = vmatmul.bf16.gmra.mxu0 %v182
    %v556 = vpop.f32.mrf.mxu0
    %v557 = vadd.f32 %v543, %v556
    %v558 = vpop.f32.mrf.mxu0
    %v559 = vadd.f32 %v545, %v558
    %560 = vdwg.mxu0
    %561 = vadd.xlane.f32.xlu0 %v557
    %v562 = vpop.xlane.xlu0 %561
    %563 = vadd.xlane.f32.xlu0 %v559
    %v564 = vpop.xlane.xlu0 %563
    %v565 = vrcp.pop 128.0
    %v566 = vmul.f32 128.0, %v565
    %v567 = vsub.f32 1.0, %v566
    %v568 = vmul.f32 %v565, %v567
    %v569 = vadd.f32 %v565, %v568
    %vm570 = vweird.f32 %v565
    %v571 = vsel %vm570, %v565, %v569
    %v572 = vmul.f32 %v562, %v571
    %v573 = vmul.f32 %v564, %v571
    %v574 = vmul.f32 %v557, %v557
    %v575 = vmul.f32 %v559, %v559
    %576 = vadd.xlane.f32.xlu0 %v574
    %v577 = vpop.xlane.xlu0 %576
    %578 = vadd.xlane.f32.xlu0 %v575
    %v579 = vpop.xlane.xlu0 %578
    %v580 = vmul.f32 %v577, %v571
    %v581 = vmul.f32 %v579, %v571
    %v582 = vmul.f32 %v572, %v572
    %v583 = vmul.f32 %v573, %v573
    %v584 = vsub.f32 %v580, %v582
    %v585 = vsub.f32 %v581, %v583
    %v586 = vsub.f32 %v557, %v572
    %v587 = vsub.f32 %v559, %v573
    %v588 = vadd.f32 %v584, 1e-06
    %v589 = vadd.f32 %v585, 1e-06
    %v590 = vrsqrt.pop %v588
    %v591 = vmul.f32 %v590, %v588
    %v592 = vmul.f32 %v591, %v590
    %v593 = vmul.f32 0.5, %v592
    %v594 = vsub.f32 1.5, %v593
    %v595 = vmul.f32 %v590, %v594
    %vm596 = vweird.f32 %v588
    %vm597 = vweird.f32 %v590
    %vm598 = vmor %vm596, %vm597
    %v599 = vsel %vm598, %v590, %v595
    %v600 = vrsqrt.pop %v589
    %v601 = vmul.f32 %v600, %v589
    %v602 = vmul.f32 %v601, %v600
    %v603 = vmul.f32 0.5, %v602
    %v604 = vsub.f32 1.5, %v603
    %v605 = vmul.f32 %v600, %v604
    %vm606 = vweird.f32 %v589
    %vm607 = vweird.f32 %v600
    %vm608 = vmor %vm606, %vm607
    %v609 = vsel %vm608, %v600, %v605
    %v610 = vmul.f32 %v586, %v599
    %v611 = vmul.f32 %v587, %v609
    %v612 = vld [vmem:[%s3] sm:$0x1]
    %v614 = vperm.slane %v612, 0
    %v616 = vmul.f32 %v610, %v614
    %v617 = vmul.f32 %v611, %v614
    %v618 = vld [vmem:[%s4] sm:$0x1]
    %v620 = vperm.slane %v618, 0
    %v622 = vadd.f32 %v616, %v620
    %v623 = vadd.f32 %v617, %v620
    %624 = vst [vmem:[#allocation7] sm:$0xff] %v622
    %625 = vst [vmem:[#allocation7 + $0x8] sm:$0xff] %v623
    // Predicated region
    $region30: #{tpu_custom_call.1} parent=1 // pred_check
      _
    $region31: #{tpu_custom_call.1} parent=1 // pred_check_branch
      %627 = sbr.rel (0) target = $region33
    $region32: #{tpu_custom_call.1} parent=1 // pred_region
      %629 = vsyncadd [#allocation4], 0
      %s630 = sshll.u32 [#allocation7], 4
      %s631 = int_to_ptr.vmem [resolvable:$true] %s630
      %s632 = sshll.u32 %s5, 4
      %s633 = int_to_ptr.hbm [resolvable:$true] %s632
      %638 = dma.vmem_to_hbm [thread:$0]  %s631, 256, %s633, [#allocation4], 128, 128, 8
    $region33: #{tpu_custom_call.1} parent=1 // pred_fallthru
      _
    // Predicated region
    $region34: #{tpu_custom_call.1} parent=1 // pred_check
      _
    $region35: #{tpu_custom_call.1} parent=1 // pred_check_branch
      %640 = sbr.rel (0) target = $region37
    $region36: #{tpu_custom_call.1} parent=1 // pred_region
      %642 = dma.done [#allocation4], 256
    $region37: #{tpu_custom_call.1} parent=1 // pred_fallthru
      _
    %643 = vsyncpa [#allocation3], 1
    %644 = vsyncpa [#allocation6], 1
    %645 = vsyncpa [#allocation4], 1

</llo_original>
